<compile_context>
chip_gen: v6e
topology: v6e:2x2x1
jax: 0.10.0
libtpu: 0.0.40
codegen_flags: <defaults>
</compile_context>

<pallas_src>
import functools
import math

import jax
import jax.numpy as jnp
from jax.experimental import pallas as pl
from jax.experimental.pallas import tpu as pltpu


_MAX_CHUNK = 128   # rows gathered per grid step (= number of DMA semaphores)


def _round_up(x, m):
    return (x + m - 1) // m * m


# ----------------------------------------------------------------- helpers --

def _start_row_gathers(idx_ref, w_hbm, dst, sems, base, n_rows):
    """Issue n_rows HBM->VMEM row-gather DMAs back-to-back (no waits)."""
    for j in range(n_rows):
        pltpu.make_async_copy(
            w_hbm.at[pl.ds(idx_ref[base + j], 1)],   # (1, D) row in HBM
            dst.at[pl.ds(j, 1)],                     # (1, D) slot in VMEM
            sems.at[j],
        ).start()


def _wait_row_gathers(idx_ref, w_hbm, dst, sems, base, n_rows):
    for j in range(n_rows):
        pltpu.make_async_copy(
            w_hbm.at[pl.ds(idx_ref[base + j], 1)],
            dst.at[pl.ds(j, 1)],
            sems.at[j],
        ).wait()


# ----------------------------------------------------------------- kernels --

def _gather_kernel(idx_ref, w_hbm, out_ref, sems, *, tb):
    # reduction=None: out[c*tb + j] = weight[idx[c*tb + j]]
    # Rows are DMA'd straight into the pipelined (tb, D) output block; the
    # kernel body does no vector compute at all (pure gather stream).
    base = pl.program_id(0) * tb
    _start_row_gathers(idx_ref, w_hbm, out_ref, sems, base, tb)
    _wait_row_gathers(idx_ref, w_hbm, out_ref, sems, base, tb)


def _gather_reduce_w_kernel(idx_ref, w_hbm, tw_ref, out_ref,
                            rows, acc, sems, *, ts, s_pad, scale):
    # out[b] = scale * sum_s weight[x[b,s]] * w[b,s]
    b = pl.program_id(0)
    sc = pl.program_id(1)
    base = b * s_pad + sc * ts

    _start_row_gathers(idx_ref, w_hbm, rows, sems, base, ts)

    @pl.when(sc == 0)
    def _():
        acc[...] = jnp.zeros_like(acc)

    _wait_row_gathers(idx_ref, w_hbm, rows, sems, base, ts)

    # Weighted chunk reduction as one (1, ts) x (ts, D) MXU matmul with f32
    # accumulation; token weights live on the lane axis so no transpose is
    # needed.  Padded tail tokens carry weight 0 and contribute nothing.
    acc[...] += jnp.dot(tw_ref[0].astype(rows.dtype), rows[...],
                        preferred_element_type=jnp.float32)

    @pl.when(sc == pl.num_programs(1) - 1)
    def _():
        out_ref[0] = (acc[...] * scale).astype(out_ref.dtype)


def _gather_reduce_nw_kernel(idx_ref, w_hbm, out_ref,
                             rows, acc, sems, *, ts, s_pad, s_valid, scale):
    # out[b] = scale * sum_s weight[x[b,s]]   (no token-weight stream at all)
    b = pl.program_id(0)
    sc = pl.program_id(1)
    base = b * s_pad + sc * ts

    _start_row_gathers(idx_ref, w_hbm, rows, sems, base, ts)

    @pl.when(sc == 0)
    def _():
        acc[...] = jnp.zeros_like(acc)

    _wait_row_gathers(idx_ref, w_hbm, rows, sems, base, ts)

    r = rows[...].astype(jnp.float32)
    if s_valid % ts != 0:
        # Only the last chunk is ragged: mask padded rows (which fetched row 0).
        row_id = jax.lax.broadcasted_iota(jnp.int32, r.shape, 0) + sc * ts
        r = jnp.where(row_id < s_valid, r, 0.0)
    acc[...] += jnp.sum(r, axis=0, keepdims=True)

    @pl.when(sc == pl.num_programs(1) - 1)
    def _():
        out_ref[0] = (acc[...] * scale).astype(out_ref.dtype)


# ----------------------------------------------------------------- wrapper --

def embedding_forward(x, weight, w=None, reduction="sum"):
    """Pallas implementation of Embedding.forward.

    x        : (B, S) integer token indices in [0, num_embeddings).
               (Out-of-range indices are NOT checked -- same caveat as torch;
               they would drive an out-of-bounds gather DMA.)
    weight   : (num_embeddings, embedding_dim) embedding table.
    w        : optional (B, S) per-token weights.
    reduction: None | 'sum' | 'mean'.
    Returns (B, S, D) if reduction is None else (B, D).
    """
    x = jnp.asarray(x)
    B, S = x.shape
    V, D = weight.shape
    idx = x.astype(jnp.int32)
    itemsize = jnp.dtype(weight.dtype).itemsize

    if reduction is None:
        n = B * S
        tb = min(_round_up(n, 8), _MAX_CHUNK)        # rows per grid step
        n_pad = _round_up(n, tb)
        idx_flat = jnp.pad(idx.reshape(n), (0, n_pad - n))   # pad with row 0

        out = pl.pallas_call(
            functools.partial(_gather_kernel, tb=tb),
            out_shape=jax.ShapeDtypeStruct((n_pad, D), weight.dtype),
            grid_spec=pltpu.PrefetchScalarGridSpec(
                num_scalar_prefetch=1,
                grid=(n_pad // tb,),
                in_specs=[pl.BlockSpec(memory_space=pl.ANY)],   # table in HBM
                out_specs=pl.BlockSpec((tb, D), lambda c, idx_ref: (c, 0)),
                scratch_shapes=[pltpu.SemaphoreType.DMA((tb,))],
            ),
            compiler_params=pltpu.CompilerParams(
                dimension_semantics=("parallel",)),
            cost_estimate=pl.CostEstimate(
                flops=0, transcendentals=0,
                bytes_accessed=2 * n_pad * D * itemsize + n_pad * 4),
        )(idx_flat, weight)
        return out[:n].reshape(B, S, D)

    if reduction not in ("sum", "mean"):
        raise NotImplementedError(f"Unknown reduction: {reduction}")

    scale = (1.0 / S) if reduction == "mean" else 1.0
    ts = min(_round_up(S, 8), _MAX_CHUNK)             # tokens per grid step
    s_pad = _round_up(S, ts)
    idx_flat = jnp.pad(idx, ((0, 0), (0, s_pad - S))).reshape(B * s_pad)

    scratch = [
        pltpu.VMEM((ts, D), weight.dtype),            # gathered rows
        pltpu.VMEM((1, D), jnp.float32),              # f32 accumulator
        pltpu.SemaphoreType.DMA((ts,)),               # one sem per in-flight DMA
    ]
    out_spec = pl.BlockSpec((1, 1, D), lambda b, sc, idx_ref: (b, 0, 0))

    if w is not None:
        tw = jnp.asarray(w, jnp.float32).reshape(B, S)
        tw = jnp.pad(tw, ((0, 0), (0, s_pad - S)))    # zero-weight the pad rows
        tw = tw.reshape(B, 1, s_pad)                  # weights on the lane axis
        kernel = functools.partial(_gather_reduce_w_kernel,
                                   ts=ts, s_pad=s_pad, scale=scale)
        in_specs = [
            pl.BlockSpec(memory_space=pl.ANY),        # table in HBM
            pl.BlockSpec((1, 1, ts), lambda b, sc, idx_ref: (b, 0, sc)),
        ]
        operands = (idx_flat, weight, tw)
        flops = 2 * B * s_pad * D
    else:
        kernel = functools.partial(_gather_reduce_nw_kernel,
                                   ts=ts, s_pad=s_pad, s_valid=S, scale=scale)
        in_specs = [pl.BlockSpec(memory_space=pl.ANY)]
        operands = (idx_flat, weight)
        flops = B * s_pad * D

    out = pl.pallas_call(
        kernel,
        out_shape=jax.ShapeDtypeStruct((B, 1, D), weight.dtype),
        grid_spec=pltpu.PrefetchScalarGridSpec(
            num_scalar_prefetch=1,
            grid=(B, s_pad // ts),
            in_specs=in_specs,
            out_specs=out_spec,
            scratch_shapes=scratch,
        ),
        compiler_params=pltpu.CompilerParams(
            dimension_semantics=("parallel", "arbitrary")),
        cost_estimate=pl.CostEstimate(
            flops=flops, transcendentals=0,
            bytes_accessed=(B * s_pad * D + B * D) * itemsize + B * s_pad * 8),
    )(*operands)
    return out.reshape(B, D)


# -------------------------------------------------------------------- init --

def init_embedding(key, num_embeddings, embedding_dim, padding_idx=None):
    """Mirror Embedding.reset_parameters: xavier_uniform_ with relu gain,
    then zero the padding row."""
    gain = math.sqrt(2.0)  # nn.init.calculate_gain('relu')
    bound = gain * math.sqrt(6.0 / (num_embeddings + embedding_dim))
    weight = jax.random.uniform(
        key, (num_embeddings, embedding_dim),
        minval=-bound, maxval=bound, dtype=jnp.float32,
    )
    if padding_idx is not None:
        weight = weight.at[padding_idx].set(0.0)
    return weight


# -------------------------------------------------------------------- test --

if __name__ == "__main__":
    key = jax.random.PRNGKey(0)
    k_w, k_x, k_tw = jax.random.split(key, 3)

    num_embeddings = 64
    embedding_dim = 128
    batch, seq = 2, 8
    padding_idx = 0

    weight = init_embedding(k_w, num_embeddings, embedding_dim, padding_idx)
    x = jax.random.randint(k_x, (batch, seq), 0, num_embeddings, dtype=jnp.int32)
    w = jax.random.uniform(k_tw, (batch, seq), dtype=jnp.float32)

    # reduction='sum' with token weights (weighted EmbeddingBag)
    out_sum = jax.block_until_ready(
        embedding_forward(x, weight, w=w, reduction="sum"))
    ref_sum = jnp.sum(weight[x] * w[..., None], axis=1)
    assert out_sum.shape == (batch, embedding_dim)
    assert jnp.allclose(out_sum, ref_sum, atol=1e-5, rtol=1e-5), "sum mismatch"

    # reduction='mean' without token weights (no-weight kernel variant)
    out_mean = jax.block_until_ready(
        embedding_forward(x, weight, reduction="mean"))
    ref_mean = jnp.mean(weight[x], axis=1)
    assert jnp.allclose(out_mean, ref_mean, atol=1e-5, rtol=1e-5), "mean mismatch"

    # reduction=None (plain sequential-model gather)
    out_none = jax.block_until_ready(
        embedding_forward(x, weight, reduction=None))
    ref_none = weight[x]
    assert out_none.shape == (batch, seq, embedding_dim)
    assert jnp.allclose(out_none, ref_none), "gather mismatch"

    print("KERNEL_OK")
</pallas_src>

<mosaic_0001>
module attributes {stable_mosaic.version = 11 : i64} {
  func.func @_gather_reduce_w_kernel(%arg0: i32, %arg1: i32, %arg2: memref<16xi32, #tpu.memory_space<smem>>, %arg3: memref<64x128xf32, #tpu.memory_space<any>>, %arg4: memref<1x1x8xf32, #tpu.memory_space<vmem>>, %arg5: memref<1x1x128xf32, #tpu.memory_space<vmem>>, %arg6: memref<8x128xf32, #tpu.memory_space<vmem>>, %arg7: memref<1x128xf32, #tpu.memory_space<vmem>>, %arg8: memref<8x!tpu.dma_semaphore, #tpu.memory_space<semaphore_mem>>) attributes {dimension_semantics = [#tpu.dimension_semantics<parallel>, #tpu.dimension_semantics<arbitrary>], iteration_bounds = array<i64: 2, 1>, scalar_prefetch = 1 : i64, scratch_operands = 3 : i64, tpu.core_type = #tpu.core_type<tc>, window_params = [{}, {transform_indices = @transform_1, window_bounds = array<i64: 1, 1, 8>}, {transform_indices = @transform_2, window_bounds = array<i64: 1, 1, 128>}]} {
    %c8_i32 = arith.constant 8 : i32
    %0 = arith.muli %arg0, %c8_i32 : i32
    %c8_i32_0 = arith.constant 8 : i32
    %1 = arith.muli %arg1, %c8_i32_0 : i32
    %2 = arith.addi %0, %1 : i32
    %c0_i32 = arith.constant 0 : i32
    %3 = arith.addi %2, %c0_i32 : i32
    %4 = arith.index_cast %3 : i32 to index
    %5 = memref.load %arg2[%4] : memref<16xi32, #tpu.memory_space<smem>>
    %c0_i32_1 = arith.constant 0 : i32
    %c0_i32_2 = arith.constant 0 : i32
    %6 = tpu.memref_slice %arg3[%5, %c0_i32_2] : memref<64x128xf32, #tpu.memory_space<any>> -> memref<1x128xf32, #tpu.memory_space<any>>
    %c0_i32_3 = arith.constant 0 : i32
    %c0_i32_4 = arith.constant 0 : i32
    %7 = tpu.memref_slice %arg6[%c0_i32_3, %c0_i32_4] : memref<8x128xf32, #tpu.memory_space<vmem>> -> memref<1x128xf32, #tpu.memory_space<vmem>>
    %8 = tpu.memref_slice %arg8[%c0_i32_1] : memref<8x!tpu.dma_semaphore, #tpu.memory_space<semaphore_mem>> -> memref<1x!tpu.dma_semaphore, #tpu.memory_space<semaphore_mem>>
    %9 = tpu.memref_squeeze %8 : memref<1x!tpu.dma_semaphore, #tpu.memory_space<semaphore_mem>> -> memref<!tpu.dma_semaphore, #tpu.memory_space<semaphore_mem>>
    tpu.enqueue_dma source(%6 : memref<1x128xf32, #tpu.memory_space<any>>) target(%7 : memref<1x128xf32, #tpu.memory_space<vmem>>) target_semaphore(%9 : memref<!tpu.dma_semaphore, #tpu.memory_space<semaphore_mem>>)
    %c1_i32 = arith.constant 1 : i32
    %10 = arith.addi %2, %c1_i32 : i32
    %11 = arith.index_cast %10 : i32 to index
    %12 = memref.load %arg2[%11] : memref<16xi32, #tpu.memory_space<smem>>
    %c1_i32_5 = arith.constant 1 : i32
    %c0_i32_6 = arith.constant 0 : i32
    %13 = tpu.memref_slice %arg3[%12, %c0_i32_6] : memref<64x128xf32, #tpu.memory_space<any>> -> memref<1x128xf32, #tpu.memory_space<any>>
    %c1_i32_7 = arith.constant 1 : i32
    %c0_i32_8 = arith.constant 0 : i32
    %14 = tpu.memref_slice %arg6[%c1_i32_7, %c0_i32_8] : memref<8x128xf32, #tpu.memory_space<vmem>> -> memref<1x128xf32, #tpu.memory_space<vmem>>
    %15 = tpu.memref_slice %arg8[%c1_i32_5] : memref<8x!tpu.dma_semaphore, #tpu.memory_space<semaphore_mem>> -> memref<1x!tpu.dma_semaphore, #tpu.memory_space<semaphore_mem>>
    %16 = tpu.memref_squeeze %15 : memref<1x!tpu.dma_semaphore, #tpu.memory_space<semaphore_mem>> -> memref<!tpu.dma_semaphore, #tpu.memory_space<semaphore_mem>>
    tpu.enqueue_dma source(%13 : memref<1x128xf32, #tpu.memory_space<any>>) target(%14 : memref<1x128xf32, #tpu.memory_space<vmem>>) target_semaphore(%16 : memref<!tpu.dma_semaphore, #tpu.memory_space<semaphore_mem>>)
    %c2_i32 = arith.constant 2 : i32
    %17 = arith.addi %2, %c2_i32 : i32
    %18 = arith.index_cast %17 : i32 to index
    %19 = memref.load %arg2[%18] : memref<16xi32, #tpu.memory_space<smem>>
    %c2_i32_9 = arith.constant 2 : i32
    %c0_i32_10 = arith.constant 0 : i32
    %20 = tpu.memref_slice %arg3[%19, %c0_i32_10] : memref<64x128xf32, #tpu.memory_space<any>> -> memref<1x128xf32, #tpu.memory_space<any>>
    %c2_i32_11 = arith.constant 2 : i32
    %c0_i32_12 = arith.constant 0 : i32
    %21 = tpu.memref_slice %arg6[%c2_i32_11, %c0_i32_12] : memref<8x128xf32, #tpu.memory_space<vmem>> -> memref<1x128xf32, #tpu.memory_space<vmem>>
    %22 = tpu.memref_slice %arg8[%c2_i32_9] : memref<8x!tpu.dma_semaphore, #tpu.memory_space<semaphore_mem>> -> memref<1x!tpu.dma_semaphore, #tpu.memory_space<semaphore_mem>>
    %23 = tpu.memref_squeeze %22 : memref<1x!tpu.dma_semaphore, #tpu.memory_space<semaphore_mem>> -> memref<!tpu.dma_semaphore, #tpu.memory_space<semaphore_mem>>
    tpu.enqueue_dma source(%20 : memref<1x128xf32, #tpu.memory_space<any>>) target(%21 : memref<1x128xf32, #tpu.memory_space<vmem>>) target_semaphore(%23 : memref<!tpu.dma_semaphore, #tpu.memory_space<semaphore_mem>>)
    %c3_i32 = arith.constant 3 : i32
    %24 = arith.addi %2, %c3_i32 : i32
    %25 = arith.index_cast %24 : i32 to index
    %26 = memref.load %arg2[%25] : memref<16xi32, #tpu.memory_space<smem>>
    %c3_i32_13 = arith.constant 3 : i32
    %c0_i32_14 = arith.constant 0 : i32
    %27 = tpu.memref_slice %arg3[%26, %c0_i32_14] : memref<64x128xf32, #tpu.memory_space<any>> -> memref<1x128xf32, #tpu.memory_space<any>>
    %c3_i32_15 = arith.constant 3 : i32
    %c0_i32_16 = arith.constant 0 : i32
    %28 = tpu.memref_slice %arg6[%c3_i32_15, %c0_i32_16] : memref<8x128xf32, #tpu.memory_space<vmem>> -> memref<1x128xf32, #tpu.memory_space<vmem>>
    %29 = tpu.memref_slice %arg8[%c3_i32_13] : memref<8x!tpu.dma_semaphore, #tpu.memory_space<semaphore_mem>> -> memref<1x!tpu.dma_semaphore, #tpu.memory_space<semaphore_mem>>
    %30 = tpu.memref_squeeze %29 : memref<1x!tpu.dma_semaphore, #tpu.memory_space<semaphore_mem>> -> memref<!tpu.dma_semaphore, #tpu.memory_space<semaphore_mem>>
    tpu.enqueue_dma source(%27 : memref<1x128xf32, #tpu.memory_space<any>>) target(%28 : memref<1x128xf32, #tpu.memory_space<vmem>>) target_semaphore(%30 : memref<!tpu.dma_semaphore, #tpu.memory_space<semaphore_mem>>)
    %c4_i32 = arith.constant 4 : i32
    %31 = arith.addi %2, %c4_i32 : i32
    %32 = arith.index_cast %31 : i32 to index
    %33 = memref.load %arg2[%32] : memref<16xi32, #tpu.memory_space<smem>>
    %c4_i32_17 = arith.constant 4 : i32
    %c0_i32_18 = arith.constant 0 : i32
    %34 = tpu.memref_slice %arg3[%33, %c0_i32_18] : memref<64x128xf32, #tpu.memory_space<any>> -> memref<1x128xf32, #tpu.memory_space<any>>
    %c4_i32_19 = arith.constant 4 : i32
    %c0_i32_20 = arith.constant 0 : i32
    %35 = tpu.memref_slice %arg6[%c4_i32_19, %c0_i32_20] : memref<8x128xf32, #tpu.memory_space<vmem>> -> memref<1x128xf32, #tpu.memory_space<vmem>>
    %36 = tpu.memref_slice %arg8[%c4_i32_17] : memref<8x!tpu.dma_semaphore, #tpu.memory_space<semaphore_mem>> -> memref<1x!tpu.dma_semaphore, #tpu.memory_space<semaphore_mem>>
    %37 = tpu.memref_squeeze %36 : memref<1x!tpu.dma_semaphore, #tpu.memory_space<semaphore_mem>> -> memref<!tpu.dma_semaphore, #tpu.memory_space<semaphore_mem>>
    tpu.enqueue_dma source(%34 : memref<1x128xf32, #tpu.memory_space<any>>) target(%35 : memref<1x128xf32, #tpu.memory_space<vmem>>) target_semaphore(%37 : memref<!tpu.dma_semaphore, #tpu.memory_space<semaphore_mem>>)
    %c5_i32 = arith.constant 5 : i32
    %38 = arith.addi %2, %c5_i32 : i32
    %39 = arith.index_cast %38 : i32 to index
    %40 = memref.load %arg2[%39] : memref<16xi32, #tpu.memory_space<smem>>
    %c5_i32_21 = arith.constant 5 : i32
    %c0_i32_22 = arith.constant 0 : i32
    %41 = tpu.memref_slice %arg3[%40, %c0_i32_22] : memref<64x128xf32, #tpu.memory_space<any>> -> memref<1x128xf32, #tpu.memory_space<any>>
    %c5_i32_23 = arith.constant 5 : i32
    %c0_i32_24 = arith.constant 0 : i32
    %42 = tpu.memref_slice %arg6[%c5_i32_23, %c0_i32_24] : memref<8x128xf32, #tpu.memory_space<vmem>> -> memref<1x128xf32, #tpu.memory_space<vmem>>
    %43 = tpu.memref_slice %arg8[%c5_i32_21] : memref<8x!tpu.dma_semaphore, #tpu.memory_space<semaphore_mem>> -> memref<1x!tpu.dma_semaphore, #tpu.memory_space<semaphore_mem>>
    %44 = tpu.memref_squeeze %43 : memref<1x!tpu.dma_semaphore, #tpu.memory_space<semaphore_mem>> -> memref<!tpu.dma_semaphore, #tpu.memory_space<semaphore_mem>>
    tpu.enqueue_dma source(%41 : memref<1x128xf32, #tpu.memory_space<any>>) target(%42 : memref<1x128xf32, #tpu.memory_space<vmem>>) target_semaphore(%44 : memref<!tpu.dma_semaphore, #tpu.memory_space<semaphore_mem>>)
    %c6_i32 = arith.constant 6 : i32
    %45 = arith.addi %2, %c6_i32 : i32
    %46 = arith.index_cast %45 : i32 to index
    %47 = memref.load %arg2[%46] : memref<16xi32, #tpu.memory_space<smem>>
    %c6_i32_25 = arith.constant 6 : i32
    %c0_i32_26 = arith.constant 0 : i32
    %48 = tpu.memref_slice %arg3[%47, %c0_i32_26] : memref<64x128xf32, #tpu.memory_space<any>> -> memref<1x128xf32, #tpu.memory_space<any>>
    %c6_i32_27 = arith.constant 6 : i32
    %c0_i32_28 = arith.constant 0 : i32
    %49 = tpu.memref_slice %arg6[%c6_i32_27, %c0_i32_28] : memref<8x128xf32, #tpu.memory_space<vmem>> -> memref<1x128xf32, #tpu.memory_space<vmem>>
    %50 = tpu.memref_slice %arg8[%c6_i32_25] : memref<8x!tpu.dma_semaphore, #tpu.memory_space<semaphore_mem>> -> memref<1x!tpu.dma_semaphore, #tpu.memory_space<semaphore_mem>>
    %51 = tpu.memref_squeeze %50 : memref<1x!tpu.dma_semaphore, #tpu.memory_space<semaphore_mem>> -> memref<!tpu.dma_semaphore, #tpu.memory_space<semaphore_mem>>
    tpu.enqueue_dma source(%48 : memref<1x128xf32, #tpu.memory_space<any>>) target(%49 : memref<1x128xf32, #tpu.memory_space<vmem>>) target_semaphore(%51 : memref<!tpu.dma_semaphore, #tpu.memory_space<semaphore_mem>>)
    %c7_i32 = arith.constant 7 : i32
    %52 = arith.addi %2, %c7_i32 : i32
    %53 = arith.index_cast %52 : i32 to index
    %54 = memref.load %arg2[%53] : memref<16xi32, #tpu.memory_space<smem>>
    %c7_i32_29 = arith.constant 7 : i32
    %c0_i32_30 = arith.constant 0 : i32
    %55 = tpu.memref_slice %arg3[%54, %c0_i32_30] : memref<64x128xf32, #tpu.memory_space<any>> -> memref<1x128xf32, #tpu.memory_space<any>>
    %c7_i32_31 = arith.constant 7 : i32
    %c0_i32_32 = arith.constant 0 : i32
    %56 = tpu.memref_slice %arg6[%c7_i32_31, %c0_i32_32] : memref<8x128xf32, #tpu.memory_space<vmem>> -> memref<1x128xf32, #tpu.memory_space<vmem>>
    %57 = tpu.memref_slice %arg8[%c7_i32_29] : memref<8x!tpu.dma_semaphore, #tpu.memory_space<semaphore_mem>> -> memref<1x!tpu.dma_semaphore, #tpu.memory_space<semaphore_mem>>
    %58 = tpu.memref_squeeze %57 : memref<1x!tpu.dma_semaphore, #tpu.memory_space<semaphore_mem>> -> memref<!tpu.dma_semaphore, #tpu.memory_space<semaphore_mem>>
    tpu.enqueue_dma source(%55 : memref<1x128xf32, #tpu.memory_space<any>>) target(%56 : memref<1x128xf32, #tpu.memory_space<vmem>>) target_semaphore(%58 : memref<!tpu.dma_semaphore, #tpu.memory_space<semaphore_mem>>)
    %c0_i32_33 = arith.constant 0 : i32
    %59 = arith.cmpi eq, %arg1, %c0_i32_33 : i32
    %60 = arith.extui %59 : i1 to i32
    %c0_i32_34 = arith.constant 0 : i32
    %61 = arith.cmpi ne, %60, %c0_i32_34 : i32
    scf.if %61 {
      %cst_85 = arith.constant 0.000000e+00 : f32
      %128 = vector.broadcast %cst_85 : f32 to vector<1x128xf32>
      %c0_86 = arith.constant 0 : index
      %c0_87 = arith.constant 0 : index
      %129 = vector.load %arg7[%c0_86, %c0_87] : memref<1x128xf32, #tpu.memory_space<vmem>>, vector<1x128xf32>
      tpu.vector_store %arg7[%c0_86, %c0_87], %128 {strides = array<i32>} : memref<1x128xf32, #tpu.memory_space<vmem>>, vector<1x128xf32>,
    } else {
    }
    %c0_i32_35 = arith.constant 0 : i32
    %62 = arith.addi %2, %c0_i32_35 : i32
    %63 = arith.index_cast %62 : i32 to index
    %64 = memref.load %arg2[%63] : memref<16xi32, #tpu.memory_space<smem>>
    %c0_i32_36 = arith.constant 0 : i32
    %c0_i32_37 = arith.constant 0 : i32
    %65 = tpu.memref_slice %arg3[%64, %c0_i32_37] : memref<64x128xf32, #tpu.memory_space<any>> -> memref<1x128xf32, #tpu.memory_space<any>>
    %c0_i32_38 = arith.constant 0 : i32
    %c0_i32_39 = arith.constant 0 : i32
    %66 = tpu.memref_slice %arg6[%c0_i32_38, %c0_i32_39] : memref<8x128xf32, #tpu.memory_space<vmem>> -> memref<1x128xf32, #tpu.memory_space<vmem>>
    %67 = tpu.memref_slice %arg8[%c0_i32_36] : memref<8x!tpu.dma_semaphore, #tpu.memory_space<semaphore_mem>> -> memref<1x!tpu.dma_semaphore, #tpu.memory_space<semaphore_mem>>
    %68 = tpu.memref_squeeze %67 : memref<1x!tpu.dma_semaphore, #tpu.memory_space<semaphore_mem>> -> memref<!tpu.dma_semaphore, #tpu.memory_space<semaphore_mem>>
    tpu.wait_dma2 semaphore(%68 : memref<!tpu.dma_semaphore, #tpu.memory_space<semaphore_mem>>) src(%65 : memref<1x128xf32, #tpu.memory_space<any>>) dst(%66 : memref<1x128xf32, #tpu.memory_space<vmem>>)
    %c1_i32_40 = arith.constant 1 : i32
    %69 = arith.addi %2, %c1_i32_40 : i32
    %70 = arith.index_cast %69 : i32 to index
    %71 = memref.load %arg2[%70] : memref<16xi32, #tpu.memory_space<smem>>
    %c1_i32_41 = arith.constant 1 : i32
    %c0_i32_42 = arith.constant 0 : i32
    %72 = tpu.memref_slice %arg3[%71, %c0_i32_42] : memref<64x128xf32, #tpu.memory_space<any>> -> memref<1x128xf32, #tpu.memory_space<any>>
    %c1_i32_43 = arith.constant 1 : i32
    %c0_i32_44 = arith.constant 0 : i32
    %73 = tpu.memref_slice %arg6[%c1_i32_43, %c0_i32_44] : memref<8x128xf32, #tpu.memory_space<vmem>> -> memref<1x128xf32, #tpu.memory_space<vmem>>
    %74 = tpu.memref_slice %arg8[%c1_i32_41] : memref<8x!tpu.dma_semaphore, #tpu.memory_space<semaphore_mem>> -> memref<1x!tpu.dma_semaphore, #tpu.memory_space<semaphore_mem>>
    %75 = tpu.memref_squeeze %74 : memref<1x!tpu.dma_semaphore, #tpu.memory_space<semaphore_mem>> -> memref<!tpu.dma_semaphore, #tpu.memory_space<semaphore_mem>>
    tpu.wait_dma2 semaphore(%75 : memref<!tpu.dma_semaphore, #tpu.memory_space<semaphore_mem>>) src(%72 : memref<1x128xf32, #tpu.memory_space<any>>) dst(%73 : memref<1x128xf32, #tpu.memory_space<vmem>>)
    %c2_i32_45 = arith.constant 2 : i32
    %76 = arith.addi %2, %c2_i32_45 : i32
    %77 = arith.index_cast %76 : i32 to index
    %78 = memref.load %arg2[%77] : memref<16xi32, #tpu.memory_space<smem>>
    %c2_i32_46 = arith.constant 2 : i32
    %c0_i32_47 = arith.constant 0 : i32
    %79 = tpu.memref_slice %arg3[%78, %c0_i32_47] : memref<64x128xf32, #tpu.memory_space<any>> -> memref<1x128xf32, #tpu.memory_space<any>>
    %c2_i32_48 = arith.constant 2 : i32
    %c0_i32_49 = arith.constant 0 : i32
    %80 = tpu.memref_slice %arg6[%c2_i32_48, %c0_i32_49] : memref<8x128xf32, #tpu.memory_space<vmem>> -> memref<1x128xf32, #tpu.memory_space<vmem>>
    %81 = tpu.memref_slice %arg8[%c2_i32_46] : memref<8x!tpu.dma_semaphore, #tpu.memory_space<semaphore_mem>> -> memref<1x!tpu.dma_semaphore, #tpu.memory_space<semaphore_mem>>
    %82 = tpu.memref_squeeze %81 : memref<1x!tpu.dma_semaphore, #tpu.memory_space<semaphore_mem>> -> memref<!tpu.dma_semaphore, #tpu.memory_space<semaphore_mem>>
    tpu.wait_dma2 semaphore(%82 : memref<!tpu.dma_semaphore, #tpu.memory_space<semaphore_mem>>) src(%79 : memref<1x128xf32, #tpu.memory_space<any>>) dst(%80 : memref<1x128xf32, #tpu.memory_space<vmem>>)
    %c3_i32_50 = arith.constant 3 : i32
    %83 = arith.addi %2, %c3_i32_50 : i32
    %84 = arith.index_cast %83 : i32 to index
    %85 = memref.load %arg2[%84] : memref<16xi32, #tpu.memory_space<smem>>
    %c3_i32_51 = arith.constant 3 : i32
    %c0_i32_52 = arith.constant 0 : i32
    %86 = tpu.memref_slice %arg3[%85, %c0_i32_52] : memref<64x128xf32, #tpu.memory_space<any>> -> memref<1x128xf32, #tpu.memory_space<any>>
    %c3_i32_53 = arith.constant 3 : i32
    %c0_i32_54 = arith.constant 0 : i32
    %87 = tpu.memref_slice %arg6[%c3_i32_53, %c0_i32_54] : memref<8x128xf32, #tpu.memory_space<vmem>> -> memref<1x128xf32, #tpu.memory_space<vmem>>
    %88 = tpu.memref_slice %arg8[%c3_i32_51] : memref<8x!tpu.dma_semaphore, #tpu.memory_space<semaphore_mem>> -> memref<1x!tpu.dma_semaphore, #tpu.memory_space<semaphore_mem>>
    %89 = tpu.memref_squeeze %88 : memref<1x!tpu.dma_semaphore, #tpu.memory_space<semaphore_mem>> -> memref<!tpu.dma_semaphore, #tpu.memory_space<semaphore_mem>>
    tpu.wait_dma2 semaphore(%89 : memref<!tpu.dma_semaphore, #tpu.memory_space<semaphore_mem>>) src(%86 : memref<1x128xf32, #tpu.memory_space<any>>) dst(%87 : memref<1x128xf32, #tpu.memory_space<vmem>>)
    %c4_i32_55 = arith.constant 4 : i32
    %90 = arith.addi %2, %c4_i32_55 : i32
    %91 = arith.index_cast %90 : i32 to index
    %92 = memref.load %arg2[%91] : memref<16xi32, #tpu.memory_space<smem>>
    %c4_i32_56 = arith.constant 4 : i32
    %c0_i32_57 = arith.constant 0 : i32
    %93 = tpu.memref_slice %arg3[%92, %c0_i32_57] : memref<64x128xf32, #tpu.memory_space<any>> -> memref<1x128xf32, #tpu.memory_space<any>>
    %c4_i32_58 = arith.constant 4 : i32
    %c0_i32_59 = arith.constant 0 : i32
    %94 = tpu.memref_slice %arg6[%c4_i32_58, %c0_i32_59] : memref<8x128xf32, #tpu.memory_space<vmem>> -> memref<1x128xf32, #tpu.memory_space<vmem>>
    %95 = tpu.memref_slice %arg8[%c4_i32_56] : memref<8x!tpu.dma_semaphore, #tpu.memory_space<semaphore_mem>> -> memref<1x!tpu.dma_semaphore, #tpu.memory_space<semaphore_mem>>
    %96 = tpu.memref_squeeze %95 : memref<1x!tpu.dma_semaphore, #tpu.memory_space<semaphore_mem>> -> memref<!tpu.dma_semaphore, #tpu.memory_space<semaphore_mem>>
    tpu.wait_dma2 semaphore(%96 : memref<!tpu.dma_semaphore, #tpu.memory_space<semaphore_mem>>) src(%93 : memref<1x128xf32, #tpu.memory_space<any>>) dst(%94 : memref<1x128xf32, #tpu.memory_space<vmem>>)
    %c5_i32_60 = arith.constant 5 : i32
    %97 = arith.addi %2, %c5_i32_60 : i32
    %98 = arith.index_cast %97 : i32 to index
    %99 = memref.load %arg2[%98] : memref<16xi32, #tpu.memory_space<smem>>
    %c5_i32_61 = arith.constant 5 : i32
    %c0_i32_62 = arith.constant 0 : i32
    %100 = tpu.memref_slice %arg3[%99, %c0_i32_62] : memref<64x128xf32, #tpu.memory_space<any>> -> memref<1x128xf32, #tpu.memory_space<any>>
    %c5_i32_63 = arith.constant 5 : i32
    %c0_i32_64 = arith.constant 0 : i32
    %101 = tpu.memref_slice %arg6[%c5_i32_63, %c0_i32_64] : memref<8x128xf32, #tpu.memory_space<vmem>> -> memref<1x128xf32, #tpu.memory_space<vmem>>
    %102 = tpu.memref_slice %arg8[%c5_i32_61] : memref<8x!tpu.dma_semaphore, #tpu.memory_space<semaphore_mem>> -> memref<1x!tpu.dma_semaphore, #tpu.memory_space<semaphore_mem>>
    %103 = tpu.memref_squeeze %102 : memref<1x!tpu.dma_semaphore, #tpu.memory_space<semaphore_mem>> -> memref<!tpu.dma_semaphore, #tpu.memory_space<semaphore_mem>>
    tpu.wait_dma2 semaphore(%103 : memref<!tpu.dma_semaphore, #tpu.memory_space<semaphore_mem>>) src(%100 : memref<1x128xf32, #tpu.memory_space<any>>) dst(%101 : memref<1x128xf32, #tpu.memory_space<vmem>>)
    %c6_i32_65 = arith.constant 6 : i32
    %104 = arith.addi %2, %c6_i32_65 : i32
    %105 = arith.index_cast %104 : i32 to index
    %106 = memref.load %arg2[%105] : memref<16xi32, #tpu.memory_space<smem>>
    %c6_i32_66 = arith.constant 6 : i32
    %c0_i32_67 = arith.constant 0 : i32
    %107 = tpu.memref_slice %arg3[%106, %c0_i32_67] : memref<64x128xf32, #tpu.memory_space<any>> -> memref<1x128xf32, #tpu.memory_space<any>>
    %c6_i32_68 = arith.constant 6 : i32
    %c0_i32_69 = arith.constant 0 : i32
    %108 = tpu.memref_slice %arg6[%c6_i32_68, %c0_i32_69] : memref<8x128xf32, #tpu.memory_space<vmem>> -> memref<1x128xf32, #tpu.memory_space<vmem>>
    %109 = tpu.memref_slice %arg8[%c6_i32_66] : memref<8x!tpu.dma_semaphore, #tpu.memory_space<semaphore_mem>> -> memref<1x!tpu.dma_semaphore, #tpu.memory_space<semaphore_mem>>
    %110 = tpu.memref_squeeze %109 : memref<1x!tpu.dma_semaphore, #tpu.memory_space<semaphore_mem>> -> memref<!tpu.dma_semaphore, #tpu.memory_space<semaphore_mem>>
    tpu.wait_dma2 semaphore(%110 : memref<!tpu.dma_semaphore, #tpu.memory_space<semaphore_mem>>) src(%107 : memref<1x128xf32, #tpu.memory_space<any>>) dst(%108 : memref<1x128xf32, #tpu.memory_space<vmem>>)
    %c7_i32_70 = arith.constant 7 : i32
    %111 = arith.addi %2, %c7_i32_70 : i32
    %112 = arith.index_cast %111 : i32 to index
    %113 = memref.load %arg2[%112] : memref<16xi32, #tpu.memory_space<smem>>
    %c7_i32_71 = arith.constant 7 : i32
    %c0_i32_72 = arith.constant 0 : i32
    %114 = tpu.memref_slice %arg3[%113, %c0_i32_72] : memref<64x128xf32, #tpu.memory_space<any>> -> memref<1x128xf32, #tpu.memory_space<any>>
    %c7_i32_73 = arith.constant 7 : i32
    %c0_i32_74 = arith.constant 0 : i32
    %115 = tpu.memref_slice %arg6[%c7_i32_73, %c0_i32_74] : memref<8x128xf32, #tpu.memory_space<vmem>> -> memref<1x128xf32, #tpu.memory_space<vmem>>
    %116 = tpu.memref_slice %arg8[%c7_i32_71] : memref<8x!tpu.dma_semaphore, #tpu.memory_space<semaphore_mem>> -> memref<1x!tpu.dma_semaphore, #tpu.memory_space<semaphore_mem>>
    %117 = tpu.memref_squeeze %116 : memref<1x!tpu.dma_semaphore, #tpu.memory_space<semaphore_mem>> -> memref<!tpu.dma_semaphore, #tpu.memory_space<semaphore_mem>>
    tpu.wait_dma2 semaphore(%117 : memref<!tpu.dma_semaphore, #tpu.memory_space<semaphore_mem>>) src(%114 : memref<1x128xf32, #tpu.memory_space<any>>) dst(%115 : memref<1x128xf32, #tpu.memory_space<vmem>>)
    %c0 = arith.constant 0 : index
    %c0_75 = arith.constant 0 : index
    %118 = vector.load %arg7[%c0, %c0_75] : memref<1x128xf32, #tpu.memory_space<vmem>>, vector<1x128xf32>
    %c0_76 = arith.constant 0 : index
    %c0_77 = arith.constant 0 : index
    %c0_78 = arith.constant 0 : index
    %119 = vector.load %arg4[%c0_76, %c0_77, %c0_78] : memref<1x1x8xf32, #tpu.memory_space<vmem>>, vector<1x1x8xf32>
    %120 = vector.shape_cast %119 : vector<1x1x8xf32> to vector<1x8xf32>
    %c0_79 = arith.constant 0 : index
    %c0_80 = arith.constant 0 : index
    %121 = vector.load %arg6[%c0_79, %c0_80] : memref<8x128xf32, #tpu.memory_space<vmem>>, vector<8x128xf32>
    %cst = arith.constant dense<0.000000e+00> : vector<1x128xf32>
    %122 = tpu.matmul %120, %121, %cst {dimension_numbers = #tpu.dot_dimension_numbers<[1], [0], [0], [1], [0, 0, 1, 1], [], []>} : vector<1x8xf32>, vector<8x128xf32>, vector<1x128xf32> -> vector<1x128xf32>
    %123 = arith.addf %118, %122 : vector<1x128xf32>
    %c0_81 = arith.constant 0 : index
    %c0_82 = arith.constant 0 : index
    %124 = vector.load %arg7[%c0_81, %c0_82] : memref<1x128xf32, #tpu.memory_space<vmem>>, vector<1x128xf32>
    tpu.vector_store %arg7[%c0_81, %c0_82], %123 {strides = array<i32>} : memref<1x128xf32, #tpu.memory_space<vmem>>, vector<1x128xf32>,
    %c0_i32_83 = arith.constant 0 : i32
    %125 = arith.cmpi eq, %arg1, %c0_i32_83 : i32
    %126 = arith.extui %125 : i1 to i32
    %c0_i32_84 = arith.constant 0 : i32
    %127 = arith.cmpi ne, %126, %c0_i32_84 : i32
    scf.if %127 {
      %c0_85 = arith.constant 0 : index
      %c0_86 = arith.constant 0 : index
      %128 = vector.load %arg7[%c0_85, %c0_86] : memref<1x128xf32, #tpu.memory_space<vmem>>, vector<1x128xf32>
      %cst_87 = arith.constant 1.000000e+00 : f32
      %129 = vector.broadcast %cst_87 : f32 to vector<1x128xf32>
      %130 = arith.mulf %128, %129 : vector<1x128xf32>
      %c0_88 = arith.constant 0 : index
      %c0_89 = arith.constant 0 : index
      %c0_90 = arith.constant 0 : index
      %131 = vector.load %arg5[%c0_88, %c0_89, %c0_90] : memref<1x1x128xf32, #tpu.memory_space<vmem>>, vector<1x1x128xf32>
      %132 = vector.shape_cast %131 : vector<1x1x128xf32> to vector<1x128xf32>
      %133 = vector.shape_cast %130 : vector<1x128xf32> to vector<1x1x128xf32>
      tpu.vector_store %arg5[%c0_88, %c0_89, %c0_90], %133 {strides = array<i32>} : memref<1x1x128xf32, #tpu.memory_space<vmem>>, vector<1x1x128xf32>,
    } else {
    }
    return
  }
  func.func @transform_1(%arg0: i32, %arg1: i32, %arg2: memref<16xi32, #tpu.memory_space<smem>>) -> (i32, i32, i32) {
    %c0_i32 = arith.constant 0 : i32
    %c0_i32_0 = arith.constant 0 : i32
    return %arg0, %c0_i32, %arg1 : i32, i32, i32
  }
  func.func @transform_2(%arg0: i32, %arg1: i32, %arg2: memref<16xi32, #tpu.memory_space<smem>>) -> (i32, i32, i32) {
    %c0_i32 = arith.constant 0 : i32
    %c0_i32_0 = arith.constant 0 : i32
    %c0_i32_1 = arith.constant 0 : i32
    return %arg0, %c0_i32, %c0_i32_0 : i32, i32, i32
  }
}

</mosaic_0001>

<llo_original>
// kernel: tpu_custom_call.1
$region0: #{tpu_custom_call.1}
  #allocation0 [shape = 'u32[]', space=smem, size = 0x4, offset = 0x4, fixed_abs, tag = 'smem constant byte address 0x4 - core index']
  #allocation1 [shape = 'u32[144,128]{1,0:T(1,128)}', space=vmem, size = 0x12000, scoped, tag = 'internal scratch']
  #allocation2 [shape = 'f32[8,128]{1,0:T(8,128)}', space=vmem, size = 0x1000, scoped, tag = 'scratch operand']
  #allocation3 [shape = 'f32[1,128]{1,0:T(1,128)}', space=vmem, size = 0x200, scoped, tag = 'scratch operand']
  #allocation4 [shape = 's32[8]{0}', space=sflag, size = 0x20, scoped, tag = 'scratch operand']
  #allocation5 [shape = 's32[1]{0}', space=sflag, size = 0x4, scoped, tag = 'scoped memory for tpu_custom_call.1']
  #allocation6 [shape = 'u8[512]{0}', space=smem, size = 0x200, scoped, tag = 'prefetched SMEM operand 0']
  #allocation9 [shape = 's32[]', space=sflag, size = 0x4, offset = 0, fixed_abs, tag = 'sflag constant byte address 0x0 - dummy sync flag']
  #allocation10 [shape = 's32[]', space=sflag, size = 0x4, offset = 0, fixed_abs, tag = 'sflag constant byte address 0x0 - dummy sync flag']
  #allocation11 [shape = 'u32[]', space=smem, size = 0x4, offset = 0x44, fixed_abs, tag = 'smem constant byte address 0x44 - assertion arg 0']
  #allocation12 [shape = 'u32[]', space=smem, size = 0x4, offset = 0x48, fixed_abs, tag = 'smem constant byte address 0x48 - assertion arg 1']
  #allocation13 [shape = 's32[]', space=sflag, size = 0x4, offset = 0, fixed_abs, tag = 'sflag constant byte address 0x0 - dummy sync flag']
  #allocation14 [shape = 's32[]', space=sflag, size = 0x4, offset = 0, fixed_abs, tag = 'sflag constant byte address 0x0 - dummy sync flag']
  #allocation15 [shape = 's32[]', space=sflag, size = 0x4, offset = 0, fixed_abs, tag = 'sflag constant byte address 0x0 - dummy sync flag']
  #allocation16 [shape = 's32[]', space=sflag, size = 0x4, offset = 0, fixed_abs, tag = 'sflag constant byte address 0x0 - dummy sync flag']
  #allocation17 [shape = 's32[]', space=sflag, size = 0x4, offset = 0, fixed_abs, tag = 'sflag constant byte address 0x0 - dummy sync flag']
  #allocation18 [shape = 's32[]', space=sflag, size = 0x4, offset = 0, fixed_abs, tag = 'sflag constant byte address 0x0 - dummy sync flag']
  #allocation19 [shape = 's32[]', space=sflag, size = 0x4, offset = 0, fixed_abs, tag = 'sflag constant byte address 0x0 - dummy sync flag']
  #allocation20 [shape = 's32[]', space=sflag, size = 0x4, offset = 0, fixed_abs, tag = 'sflag constant byte address 0x0 - dummy sync flag']
  #allocation21 [shape = 's32[]', space=sflag, size = 0x4, offset = 0, fixed_abs, tag = 'sflag constant byte address 0x0 - dummy sync flag']
  #allocation22 [shape = 's32[]', space=sflag, size = 0x4, offset = 0, fixed_abs, tag = 'sflag constant byte address 0x0 - dummy sync flag']
  #allocation23 [shape = 's32[]', space=sflag, size = 0x4, offset = 0, fixed_abs, tag = 'sflag constant byte address 0x0 - dummy sync flag']
  #allocation24 [shape = 's32[]', space=sflag, size = 0x4, offset = 0, fixed_abs, tag = 'sflag constant byte address 0x0 - dummy sync flag']
  #allocation25 [shape = 's32[]', space=sflag, size = 0x4, offset = 0, fixed_abs, tag = 'sflag constant byte address 0x0 - dummy sync flag']
  #allocation26 [shape = 's32[]', space=sflag, size = 0x4, offset = 0, fixed_abs, tag = 'sflag constant byte address 0x0 - dummy sync flag']
  %s0 = inlined_call_operand.hbm [shape: s32[16], index: 0, kind: input, shape index: {}]
  %s1 = inlined_call_operand.hbm [shape: f32[64,128], index: 1, kind: input, shape index: {}]
  %s2 = inlined_call_operand.vmem [shape: f32[2,1,8], index: 2, kind: input, shape index: {}]
  %s3 = inlined_call_operand.hbm [shape: f32[2,1,128], index: 3, kind: output, shape index: {}]
  %s4 = sld [smem:[#allocation0]]
  $region77: #{tpu_custom_call.1} parent=0
    _
  %s6 = ssub.s32 1, %s4
  %s7 = scalar_select 0, %s6, %s4
  %9 = dma.hbm_to_smem %s0, 16, [#allocation6], [#allocation5]
  %10 = dma.done [#allocation5], 16
  %11 = sfence
  $region1: #{tpu_custom_call.1} parent=0
    #allocation7 [shape = 'u8[1024]{0}', space=vmem, size = 0x400, scoped, tag = 'output window, operand 0']
    #allocation8 [shape = 's32[2]{0}', space=sflag, size = 0x8, scoped, tag = 'scoped memory for tpu_custom_call.1']
    %12 = vsyncpa [#allocation8], 0
    %s13 = scalar_lea.sflag [#allocation8], 1
    %14 = vsyncpa %s13, 0
    loop: start=0, step=1, limit=4
    $region2: #{tpu_custom_call.1} parent=1 // loop_pre_header
      _
    $region3: #{tpu_custom_call.1} parent=1 // loop_header
      %s16 = sphi 0, %s20
      %p17 = scmp.ge.s32.totalorder %s16, 4
      %s23 = sphi 0, %s35
      %s24 = sphi 0, %s31
      %s25 = sphi 0, %s23
      %s26 = sphi 0, %s24
      %s27 = sphi 0, %s25
      %s28 = sphi 0, %s26
      %s40 = sphi 0, %s42
      %s43 = sphi 0, %s40
      %s44 = sphi 0, %s43
      %s60 = sphi 0, %s44
      %s66 = sphi 0, %s68
      %s69 = sphi 0, %s66
      %s70 = sphi 0, %s69
      %s86 = sphi 0, %s70
    $region4: #{tpu_custom_call.1} parent=1 // loop_header_branch
      %19 = sbr.rel (%p17) target = $region8
    $region5: #{tpu_custom_call.1} parent=1 // loop_body
      %s21 = ssub.s32 %s16, 1
      %s22 = ssub.s32 %s16, 2
      %s29 = sadd.s32 1, %s24
      %p30 = scmp.ge.s32.totalorder %s29, 1
      %s31 = scalar_select %p30, 0, %s29
      %s32 = sadd.s32 1, %s23
      %s33 = scalar_select %p30, %s32, %s23
      %p34 = scmp.ge.s32.totalorder %s33, 2
      %s35 = scalar_select %p34, 0, %s33
      %s36 = ssub.s32 %s23, %s35
      %s37 = ssub.s32 %s24, %s31
      %s38 = sor.u32 %s36, %s37
      %p39 = scmp.eq.s32.totalorder %s38, 0
      %s41 = sadd.s32 %s40, 1
      %s42 = scalar_select %p39, %s40, %s41
      %p45 = pneg %p39
      %p46 = scmp.eq.s32.totalorder %s16, 1
      %p47 = por %p45, %p46
      %p48 = scmp.ne.s32.totalorder %s40, %s43
      %p49 = scmp.eq.s32.totalorder %s16, 0
      %p50 = por %p48, %p49
      %p51 = scmp.ne.s32.totalorder %s40, %s43
      %p52 = scmp.eq.s32.totalorder %s21, 1
      %p53 = por %p51, %p52
      %p54 = scmp.ne.s32.totalorder %s43, %s44
      %p55 = scmp.eq.s32.totalorder %s21, 0
      %p56 = por %p54, %p55
      %p57 = scmp.ne.s32.totalorder %s43, %s44
      %p58 = scmp.eq.s32.totalorder %s22, 1
      %p59 = por %p57, %p58
      %p61 = scmp.ne.s32.totalorder %s44, %s60
      %p62 = scmp.eq.s32.totalorder %s22, 0
      %p63 = por %p61, %p62
      %s64 = ssub.s32 %s23, %s35
      %p65 = scmp.eq.s32.totalorder %s64, 0
      %s67 = sadd.s32 %s66, 1
      %s68 = scalar_select %p65, %s66, %s67
      %p71 = pneg %p65
      %p72 = scmp.eq.s32.totalorder %s16, 1
      %p73 = por %p71, %p72
      %p74 = scmp.ne.s32.totalorder %s66, %s69
      %p75 = scmp.eq.s32.totalorder %s16, 0
      %p76 = por %p74, %p75
      %p77 = scmp.ne.s32.totalorder %s66, %s69
      %p78 = scmp.eq.s32.totalorder %s21, 1
      %p79 = por %p77, %p78
      %p80 = scmp.ne.s32.totalorder %s69, %s70
      %p81 = scmp.eq.s32.totalorder %s21, 0
      %p82 = por %p80, %p81
      %p83 = scmp.ne.s32.totalorder %s69, %s70
      %p84 = scmp.eq.s32.totalorder %s22, 1
      %p85 = por %p83, %p84
      %p87 = scmp.ne.s32.totalorder %s70, %s86
      %p88 = scmp.eq.s32.totalorder %s22, 0
      %p89 = por %p87, %p88
      %p90 = scmp.le.s32.totalorder 1, %s16
      %p91 = scmp.lt.s32.totalorder %s16, 3
      %p92 = pnand %p90, %p91
      %p93 = pneg %p92
      // Predicated region
      $region9: #{tpu_custom_call.1} parent=5 // pred_check
        _
      $region10: #{tpu_custom_call.1} parent=5 // pred_check_branch
        %95 = sbr.rel (%p92) target = $region12
      $region11: #{tpu_custom_call.1} parent=5 // pred_region
        %s96 = ssub.s32 %s16, 1
      $region12: #{tpu_custom_call.1} parent=5 // pred_fallthru
        _
      %p97 = scmp.lt.s32.totalorder %s16, 2
      // Predicated region
      $region13: #{tpu_custom_call.1} parent=5 // pred_check
        %p98 = pneg %p97
      $region14: #{tpu_custom_call.1} parent=5 // pred_check_branch
        %100 = sbr.rel (%p98) target = $region16
      $region15: #{tpu_custom_call.1} parent=5 // pred_region
        // Predicated region
        $region17: #{tpu_custom_call.1} parent=15 // pred_check
          %p101 = pneg %p50
        $region18: #{tpu_custom_call.1} parent=15 // pred_check_branch
          %103 = sbr.rel (%p101) target = $region20
        $region19: #{tpu_custom_call.1} parent=15 // pred_region
          %p104 = scmp.lt.s32.totalorder %s23, 1
          %s105 = scalar_select %p104, %s23, 1
          %p106 = scmp.lt.s32.totalorder %s24, 0
          %s107 = scalar_select %p106, %s24, 0
          %s108 = sadd.s32 %s107, %s105
          %s109 = scalar_lea.vmem %s2, %s108
        $region20: #{tpu_custom_call.1} parent=15 // pred_fallthru
          _
      $region16: #{tpu_custom_call.1} parent=5 // pred_fallthru
        _
      %p110 = scmp.le.s32.totalorder 1, %s16
      %p111 = scmp.lt.s32.totalorder %s16, 3
      %p112 = pnand %p110, %p111
      %p113 = pneg %p112
      // Predicated region
      $region21: #{tpu_custom_call.1} parent=5 // pred_check
        _
      $region22: #{tpu_custom_call.1} parent=5 // pred_check_branch
        %115 = sbr.rel (%p112) target = $region24
      $region23: #{tpu_custom_call.1} parent=5 // pred_region
        %s116 = ssub.s32 %s16, 1
        %p117 = scmp.lt.s32.totalorder %s25, 1
        %s118 = scalar_select %p117, %s25, 1
        %p119 = scmp.lt.s32.totalorder %s26, 0
        %s120 = scalar_select %p119, %s26, 0
        %s121 = sadd.s32 %s120, %s118
        %s122 = scalar_lea.vmem %s2, %s121
        %p123 = pneg %p56
        %p124 = pneg %p53
        %p125 = pneg %p82
        %p126 = pneg %p79
        %s127 = sand.u32 %s69, 1
        %s128 = scalar_lea.sflag [#allocation8], %s127
        %s129 = sand.u32 %s69, 1
        %s130 = scalar_lea.vmem [#allocation7], %s129
        %p131 = scmp.lt.s32.totalorder %s25, 1
        %s132 = scalar_select %p131, %s25, 1
        %p133 = scmp.lt.s32.totalorder %s26, 0
        %s134 = scalar_select %p133, %s26, 0
        %s135 = sadd.s32 %s134, %s132
        %s136 = scalar_lea.vmem %s2, %s135
        %s137 = smul.u32 %s25, 8
        %s138 = smul.u32 %s26, 8
        %s139 = sadd.s32 %s137, %s138
        %s140 = sld [smem:[#allocation6 + %s139]]
        %s141 = smul.addr %s140, 16
        %s142 = scalar_lea.hbm %s1, %s141
        // Predicated region
        $region25: #{tpu_custom_call.1} parent=23 // pred_check
          _
        $region26: #{tpu_custom_call.1} parent=23 // pred_check_branch
          %144 = sbr.rel target = $region28
        $region27: #{tpu_custom_call.1} parent=23 // pred_region
          %145 = sst [smem:[#allocation11]] [#allocation10]
          %146 = sst [smem:[#allocation12]] [#allocation9]
        $region28: #{tpu_custom_call.1} parent=23 // pred_fallthru
          _
        %148 = shalt.err (0)
        %s150 = sshll.u32 [#allocation2], 4
        %s151 = int_to_ptr.vmem [resolvable:$true] %s150
        %153 = dma.hbm_to_vmem [thread:$0]  %s142, 16, %s151, [#allocation4]
        %s154 = sadd.s32 %s139, 1
        %s155 = sld [smem:[#allocation6 + %s154]]
        %s156 = smul.addr %s155, 16
        %s157 = scalar_lea.hbm %s1, %s156
        %s158 = scalar_lea.vmem [#allocation2], 1
        %s159 = scalar_lea.sflag [#allocation4], 1
        // Predicated region
        $region29: #{tpu_custom_call.1} parent=23 // pred_check
          _
        $region30: #{tpu_custom_call.1} parent=23 // pred_check_branch
          %161 = sbr.rel target = $region32
        $region31: #{tpu_custom_call.1} parent=23 // pred_region
          %162 = sst [smem:[#allocation11]] [#allocation14]
          %163 = sst [smem:[#allocation12]] [#allocation13]
        $region32: #{tpu_custom_call.1} parent=23 // pred_fallthru
          _
        %165 = shalt.err (0)
        %s167 = sshll.u32 %s158, 4
        %s168 = int_to_ptr.vmem [resolvable:$true] %s167
        %170 = dma.hbm_to_vmem [thread:$0]  %s157, 16, %s168, %s159
        %s171 = sadd.s32 %s139, 2
        %s172 = sld [smem:[#allocation6 + %s171]]
        %s173 = smul.addr %s172, 16
        %s174 = scalar_lea.hbm %s1, %s173
        %s175 = scalar_lea.vmem [#allocation2], 2
        %s176 = scalar_lea.sflag [#allocation4], 2
        // Predicated region
        $region33: #{tpu_custom_call.1} parent=23 // pred_check
          _
        $region34: #{tpu_custom_call.1} parent=23 // pred_check_branch
          %178 = sbr.rel target = $region36
        $region35: #{tpu_custom_call.1} parent=23 // pred_region
          %179 = sst [smem:[#allocation11]] [#allocation16]
          %180 = sst [smem:[#allocation12]] [#allocation15]
        $region36: #{tpu_custom_call.1} parent=23 // pred_fallthru
          _
        %182 = shalt.err (0)
        %s184 = sshll.u32 %s175, 4
        %s185 = int_to_ptr.vmem [resolvable:$true] %s184
        %187 = dma.hbm_to_vmem [thread:$0]  %s174, 16, %s185, %s176
        %s188 = sadd.s32 %s139, 3
        %s189 = sld [smem:[#allocation6 + %s188]]
        %s190 = smul.addr %s189, 16
        %s191 = scalar_lea.hbm %s1, %s190
        %s192 = scalar_lea.vmem [#allocation2], 3
        %s193 = scalar_lea.sflag [#allocation4], 3
        // Predicated region
        $region37: #{tpu_custom_call.1} parent=23 // pred_check
          _
        $region38: #{tpu_custom_call.1} parent=23 // pred_check_branch
          %195 = sbr.rel target = $region40
        $region39: #{tpu_custom_call.1} parent=23 // pred_region
          %196 = sst [smem:[#allocation11]] [#allocation18]
          %197 = sst [smem:[#allocation12]] [#allocation17]
        $region40: #{tpu_custom_call.1} parent=23 // pred_fallthru
          _
        %199 = shalt.err (0)
        %s201 = sshll.u32 %s192, 4
        %s202 = int_to_ptr.vmem [resolvable:$true] %s201
        %204 = dma.hbm_to_vmem [thread:$0]  %s191, 16, %s202, %s193
        %s205 = sadd.s32 %s139, 4
        %s206 = sld [smem:[#allocation6 + %s205]]
        %s207 = smul.addr %s206, 16
        %s208 = scalar_lea.hbm %s1, %s207
        %s209 = scalar_lea.vmem [#allocation2], 4
        %s210 = scalar_lea.sflag [#allocation4], 4
        // Predicated region
        $region41: #{tpu_custom_call.1} parent=23 // pred_check
          _
        $region42: #{tpu_custom_call.1} parent=23 // pred_check_branch
          %212 = sbr.rel target = $region44
        $region43: #{tpu_custom_call.1} parent=23 // pred_region
          %213 = sst [smem:[#allocation11]] [#allocation20]
          %214 = sst [smem:[#allocation12]] [#allocation19]
        $region44: #{tpu_custom_call.1} parent=23 // pred_fallthru
          _
        %216 = shalt.err (0)
        %s218 = sshll.u32 %s209, 4
        %s219 = int_to_ptr.vmem [resolvable:$true] %s218
        %221 = dma.hbm_to_vmem [thread:$0]  %s208, 16, %s219, %s210
        %s222 = sadd.s32 %s139, 5
        %s223 = sld [smem:[#allocation6 + %s222]]
        %s224 = smul.addr %s223, 16
        %s225 = scalar_lea.hbm %s1, %s224
        %s226 = scalar_lea.vmem [#allocation2], 5
        %s227 = scalar_lea.sflag [#allocation4], 5
        // Predicated region
        $region45: #{tpu_custom_call.1} parent=23 // pred_check
          _
        $region46: #{tpu_custom_call.1} parent=23 // pred_check_branch
          %229 = sbr.rel target = $region48
        $region47: #{tpu_custom_call.1} parent=23 // pred_region
          %230 = sst [smem:[#allocation11]] [#allocation22]
          %231 = sst [smem:[#allocation12]] [#allocation21]
        $region48: #{tpu_custom_call.1} parent=23 // pred_fallthru
          _
        %233 = shalt.err (0)
        %s235 = sshll.u32 %s226, 4
        %s236 = int_to_ptr.vmem [resolvable:$true] %s235
        %238 = dma.hbm_to_vmem [thread:$0]  %s225, 16, %s236, %s227
        %s239 = sadd.s32 %s139, 6
        %s240 = sld [smem:[#allocation6 + %s239]]
        %s241 = smul.addr %s240, 16
        %s242 = scalar_lea.hbm %s1, %s241
        %s243 = scalar_lea.vmem [#allocation2], 6
        %s244 = scalar_lea.sflag [#allocation4], 6
        // Predicated region
        $region49: #{tpu_custom_call.1} parent=23 // pred_check
          _
        $region50: #{tpu_custom_call.1} parent=23 // pred_check_branch
          %246 = sbr.rel target = $region52
        $region51: #{tpu_custom_call.1} parent=23 // pred_region
          %247 = sst [smem:[#allocation11]] [#allocation24]
          %248 = sst [smem:[#allocation12]] [#allocation23]
        $region52: #{tpu_custom_call.1} parent=23 // pred_fallthru
          _
        %250 = shalt.err (0)
        %s252 = sshll.u32 %s243, 4
        %s253 = int_to_ptr.vmem [resolvable:$true] %s252
        %255 = dma.hbm_to_vmem [thread:$0]  %s242, 16, %s253, %s244
        %s256 = sadd.s32 %s139, 7
        %s257 = sld [smem:[#allocation6 + %s256]]
        %s258 = smul.addr %s257, 16
        %s259 = scalar_lea.hbm %s1, %s258
        %s260 = scalar_lea.vmem [#allocation2], 7
        %s261 = scalar_lea.sflag [#allocation4], 7
        // Predicated region
        $region53: #{tpu_custom_call.1} parent=23 // pred_check
          _
        $region54: #{tpu_custom_call.1} parent=23 // pred_check_branch
          %263 = sbr.rel target = $region56
        $region55: #{tpu_custom_call.1} parent=23 // pred_region
          %264 = sst [smem:[#allocation11]] [#allocation26]
          %265 = sst [smem:[#allocation12]] [#allocation25]
        $region56: #{tpu_custom_call.1} parent=23 // pred_fallthru
          _
        %267 = shalt.err (0)
        %s269 = sshll.u32 %s260, 4
        %s270 = int_to_ptr.vmem [resolvable:$true] %s269
        %272 = dma.hbm_to_vmem [thread:$0]  %s259, 16, %s270, %s261
        %p273 = scmp.eq.s32.totalorder %s26, 0
        // Predicated region
        $region57: #{tpu_custom_call.1} parent=23 // pred_check
          %p274 = pneg %p273
        $region58: #{tpu_custom_call.1} parent=23 // pred_check_branch
          %276 = sbr.rel (%p274) target = $region60
        $region59: #{tpu_custom_call.1} parent=23 // pred_region
          %277 = vst [vmem:[#allocation3] sm:$0x1] 0.0
        $region60: #{tpu_custom_call.1} parent=23 // pred_fallthru
          _
        %s278 = sld [smem:[#allocation6 + %s139]]
        %s279 = smul.u32 1, 1
        %s280 = sshll.u32 %s279, 4
        %281 = dma.done [#allocation4], %s280
        %s282 = sld [smem:[#allocation6 + %s154]]
        %s283 = sshll.u32 %s279, 4
        %284 = dma.done %s159, %s283
        %s285 = sld [smem:[#allocation6 + %s171]]
        %s286 = sshll.u32 %s279, 4
        %287 = dma.done %s176, %s286
        %s288 = sld [smem:[#allocation6 + %s188]]
        %s289 = sshll.u32 %s279, 4
        %290 = dma.done %s193, %s289
        %s291 = sld [smem:[#allocation6 + %s205]]
        %s292 = sshll.u32 %s279, 4
        %293 = dma.done %s210, %s292
        %s294 = sld [smem:[#allocation6 + %s222]]
        %s295 = sshll.u32 %s279, 4
        %296 = dma.done %s227, %s295
        %s297 = sld [smem:[#allocation6 + %s239]]
        %s298 = sshll.u32 %s279, 4
        %299 = dma.done %s244, %s298
        %s300 = sld [smem:[#allocation6 + %s256]]
        %s301 = sshll.u32 %s279, 4
        %302 = dma.done %s261, %s301
        %v303 = vld [vmem:[#allocation3] sm:$0x1]
        %v304 = vld [vmem:[%s136] sm:$0x1]
        %v305 = vld [vmem:[#allocation2] sm:$0xff]
        %vm306 = vcmask 64512
        %v308 = vsel %vm306, %v304, 0
        %310 = vmatprep.subr.mxu0 0.0
        %311 = vmatpush1.msra.mxu0 0.0
        %312 = vmatprep.subr.mxu0 0.0
        %313 = vmatpush1.msra.mxu0 0.0
        %314 = vmatprep.subr.mxu0 0.0
        %315 = vmatpush1.msra.mxu0 0.0
        %316 = vmatprep.subr.mxu0 0.0
        %317 = vmatpush1.msra.mxu0 0.0
        %318 = vmatprep.subr.mxu0 0.0
        %319 = vmatpush1.msra.mxu0 0.0
        %320 = vmatprep.subr.mxu0 0.0
        %321 = vmatpush1.msra.mxu0 0.0
        %322 = vmatprep.subr.mxu0 0.0
        %323 = vmatpush1.msra.mxu0 0.0
        %324 = vmatprep.subr.mxu0 0.0
        %325 = vmatpush1.msra.mxu0 0.0
        %326 = vmatprep.subr.mxu0 0.0
        %327 = vmatpush1.msra.mxu0 0.0
        %328 = vmatprep.subr.mxu0 0.0
        %329 = vmatpush1.msra.mxu0 0.0
        %330 = vmatprep.subr.mxu0 0.0
        %331 = vmatpush1.msra.mxu0 0.0
        %332 = vmatprep.subr.mxu0 0.0
        %333 = vmatpush1.msra.mxu0 0.0
        %334 = vmatprep.subr.mxu0 0.0
        %335 = vmatpush1.msra.mxu0 0.0
        %336 = vmatprep.subr.mxu0 0.0
        %337 = vmatpush1.msra.mxu0 0.0
        %338 = vmatprep.subr.mxu0 0.0
        %339 = vmatpush1.msra.mxu0 0.0
        %340 = vmatprep.subr.mxu0 0.0
        %341 = vmatpush1.msra.mxu0 %v305
        %342 = vmatprep.subr.mxu0 0.0
        %343 = vmatpush2.msra.mxu0 0.0
        %344 = vmatprep.subr.mxu0 0.0
        %345 = vmatpush2.msra.mxu0 0.0
        %346 = vmatprep.subr.mxu0 0.0
        %347 = vmatpush2.msra.mxu0 0.0
        %348 = vmatprep.subr.mxu0 0.0
        %349 = vmatpush2.msra.mxu0 0.0
        %350 = vmatprep.subr.mxu0 0.0
        %351 = vmatpush2.msra.mxu0 0.0
        %352 = vmatprep.subr.mxu0 0.0
        %353 = vmatpush2.msra.mxu0 0.0
        %354 = vmatprep.subr.mxu0 0.0
        %355 = vmatpush2.msra.mxu0 0.0
        %356 = vmatprep.subr.mxu0 0.0
        %357 = vmatpush2.msra.mxu0 0.0
        %358 = vmatprep.subr.mxu0 0.0
        %359 = vmatpush2.msra.mxu0 0.0
        %360 = vmatprep.subr.mxu0 0.0
        %361 = vmatpush2.msra.mxu0 0.0
        %362 = vmatprep.subr.mxu0 0.0
        %363 = vmatpush2.msra.mxu0 0.0
        %364 = vmatprep.subr.mxu0 0.0
        %365 = vmatpush2.msra.mxu0 0.0
        %366 = vmatprep.subr.mxu0 0.0
        %367 = vmatpush2.msra.mxu0 0.0
        %368 = vmatprep.subr.mxu0 0.0
        %369 = vmatpush2.msra.mxu0 0.0
        %370 = vmatprep.subr.mxu0 0.0
        %371 = vmatpush2.msra.mxu0 0.0
        %372 = vmatprep.subr.mxu0 0.0
        %373 = vmatpush2.msra.mxu0 0.0
        %374 = vmatprep.mubr.f32.mxu0 0.0
        %375 = vmatmul.mubr.f32.gmra.mxu0 %v308
        %v376 = vpop.f32.mrf.mxu0
        %v377 = vadd.f32 0.0, %v376
        %v378 = vpop.f32.mrf.mxu0
        %379 = vdwg.mxu0
        %v380 = vadd.f32 %v303, %v377
        %381 = vst [vmem:[#allocation3] sm:$0x1] %v380
        // Predicated region
        $region61: #{tpu_custom_call.1} parent=23 // pred_check
          %p382 = pneg %p273
        $region62: #{tpu_custom_call.1} parent=23 // pred_check_branch
          %384 = sbr.rel (%p382) target = $region64
        $region63: #{tpu_custom_call.1} parent=23 // pred_region
          %v385 = vld [vmem:[#allocation3] sm:$0x1]
          %386 = vst [vmem:[%s130] sm:$0x1] %v385
        $region64: #{tpu_custom_call.1} parent=23 // pred_fallthru
          _
        %s387 = sand.u32 %s69, 1
        %s388 = scalar_lea.sflag [#allocation8], %s387
        %s389 = sand.u32 %s69, 1
        %s390 = scalar_lea.vmem [#allocation7], %s389
        // Predicated region
        $region65: #{tpu_custom_call.1} parent=23 // pred_check
          %p391 = pneg %p79
        $region66: #{tpu_custom_call.1} parent=23 // pred_check_branch
          %393 = sbr.rel (%p391) target = $region68
        $region67: #{tpu_custom_call.1} parent=23 // pred_region
          %s395 = ssub.s32 16, 16
          %396 = vsyncadd %s388, %s395
          %s397 = smul.addr %s25, 16
          %s398 = scalar_lea.hbm %s3, %s397
          %s400 = sshll.u32 %s390, 4
          %s401 = int_to_ptr.vmem [resolvable:$true] %s400
          %403 = dma.vmem_to_hbm [thread:$0]  %s401, 16, %s398, %s388
        $region68: #{tpu_custom_call.1} parent=23 // pred_fallthru
          _
      $region24: #{tpu_custom_call.1} parent=5 // pred_fallthru
        _
      %p404 = scmp.le.s32.totalorder 2, %s16
      // Predicated region
      $region69: #{tpu_custom_call.1} parent=5 // pred_check
        %p405 = pneg %p404
      $region70: #{tpu_custom_call.1} parent=5 // pred_check_branch
        %407 = sbr.rel (%p405) target = $region72
      $region71: #{tpu_custom_call.1} parent=5 // pred_region
        %s408 = ssub.s32 %s16, 2
        // Predicated region
        $region73: #{tpu_custom_call.1} parent=71 // pred_check
          %p409 = pneg %p85
        $region74: #{tpu_custom_call.1} parent=71 // pred_check_branch
          %411 = sbr.rel (%p409) target = $region76
        $region75: #{tpu_custom_call.1} parent=71 // pred_region
          %s412 = sand.u32 %s70, 1
          %s413 = scalar_lea.sflag [#allocation8], %s412
          %s414 = sand.u32 %s70, 1
          %s415 = scalar_lea.vmem [#allocation7], %s414
          %416 = dma.done %s413, 16
        $region76: #{tpu_custom_call.1} parent=71 // pred_fallthru
          _
      $region72: #{tpu_custom_call.1} parent=5 // pred_fallthru
        _
    $region6: #{tpu_custom_call.1} parent=1 // loop_footer
      %s20 = sadd.s32 1, %s16
    $region7: #{tpu_custom_call.1} parent=1 // loop_footer_branch
      %15 = sbr.rel target = $region3
    $region8: #{tpu_custom_call.1} parent=1 // loop_exit
      _
    %417 = vsyncpa [#allocation8], 1
    %s418 = scalar_lea.sflag [#allocation8], 1
    %419 = vsyncpa %s418, 1
  %420 = vsyncmov [#allocation4]
  %s421 = vpop.sfrf %420
  %p422 = scmp.eq.s32.totalorder %s421, 0
  %p423 = pneg %p422
  %425 = shalt.err (%p423)
  %s426 = scalar_lea.sflag [#allocation4], 1
  %427 = vsyncmov %s426
  %s428 = vpop.sfrf %427
  %p429 = scmp.eq.s32.totalorder %s428, 0
  %p430 = pneg %p429
  %432 = shalt.err (%p430)
  %s433 = scalar_lea.sflag [#allocation4], 2
  %434 = vsyncmov %s433
  %s435 = vpop.sfrf %434
  %p436 = scmp.eq.s32.totalorder %s435, 0
  %p437 = pneg %p436
  %439 = shalt.err (%p437)
  %s440 = scalar_lea.sflag [#allocation4], 3
  %441 = vsyncmov %s440
  %s442 = vpop.sfrf %441
  %p443 = scmp.eq.s32.totalorder %s442, 0
  %p444 = pneg %p443
  %446 = shalt.err (%p444)
  %s447 = scalar_lea.sflag [#allocation4], 4
  %448 = vsyncmov %s447
  %s449 = vpop.sfrf %448
  %p450 = scmp.eq.s32.totalorder %s449, 0
  %p451 = pneg %p450
  %453 = shalt.err (%p451)
  %s454 = scalar_lea.sflag [#allocation4], 5
  %455 = vsyncmov %s454
  %s456 = vpop.sfrf %455
  %p457 = scmp.eq.s32.totalorder %s456, 0
  %p458 = pneg %p457
  %460 = shalt.err (%p458)
  %s461 = scalar_lea.sflag [#allocation4], 6
  %462 = vsyncmov %s461
  %s463 = vpop.sfrf %462
  %p464 = scmp.eq.s32.totalorder %s463, 0
  %p465 = pneg %p464
  %467 = shalt.err (%p465)
  %s468 = scalar_lea.sflag [#allocation4], 7
  %469 = vsyncmov %s468
  %s470 = vpop.sfrf %469
  %p471 = scmp.eq.s32.totalorder %s470, 0
  %p472 = pneg %p471
  %474 = shalt.err (%p472)

</llo_original>
